<compile_context>
chip_gen: v6e
topology: v6e:2x2x1
jax: 0.10.0
libtpu: 0.0.40
codegen_flags: <defaults>
</compile_context>

<pallas_src>
import functools
import math

import numpy as np
import jax
import jax.numpy as jnp
from jax.experimental import pallas as pl
from jax.experimental.pallas import tpu as pltpu


def _round_up(v, m):
    return (v + m - 1) // m * m


# ---------------- stage 1: h = dropout(x @ W_padded) ----------------

def _project_kernel(x_ref, w_ref, h_ref):
    h_ref[...] = jnp.dot(x_ref[...], w_ref[...],
                         preferred_element_type=jnp.float32).astype(h_ref.dtype)


def _project_dropout_kernel(x_ref, w_ref, m_ref, h_ref, *, scale):
    # m_ref is an int8 {0,1} keep mask; fold the 1/(1-p) scale in-kernel so the
    # mask stream stays 1 byte/element.
    h = jnp.dot(x_ref[...], w_ref[...], preferred_element_type=jnp.float32)
    keep = m_ref[...].astype(jnp.float32)
    h_ref[...] = (h * (keep * scale)).astype(h_ref.dtype)
    # TODO(synk): on real hardware pltpu.prng_seed + pltpu.prng_random_bits
    # would remove the mask input entirely, but it is not bit-compatible with
    # torch's dropout RNG stream and cannot be reproduced in the host reference.


def _stage1_row_tile(n_rows, f_in, f_out_p, budget=6 << 20):
    """Large row tile for the cheap projection stage, bounded by VMEM budget."""
    per_row = f_in * 4 + f_out_p * 1 + f_out_p * 4   # x f32 + mask i8 + h
    for cand in (4096, 2048, 1024, 512, 256, 128):
        if n_rows % cand == 0 and 2 * cand * per_row <= budget:
            return cand
    return min(n_rows, 128)   # n_rows is always a multiple of 128


# ---------------- stage 2: out = A @ h (block-sparse, K-tiled) ----------------

def _aggregate_kernel(kblk_ref, cnt_ref, a_ref, h_ref, o_ref, acc_ref):
    i = pl.program_id(0)
    j = pl.program_id(1)

    @pl.when(j == 0)
    def _():
        acc_ref[...] = jnp.zeros_like(acc_ref)

    # Only accumulate real (nonzero) A blocks; padded schedule slots repeat the
    # previous block index so no extra DMA is issued for them.
    @pl.when(j < cnt_ref[i])
    def _():
        acc_ref[...] += jnp.dot(a_ref[...], h_ref[...],
                                preferred_element_type=jnp.float32)

    @pl.when(j == pl.num_programs(1) - 1)
    def _():
        o_ref[...] = acc_ref[...].astype(o_ref.dtype)


def _block_structure(A_p, tm, tk):
    """Per-row-tile list of nonzero (tm, tk) column blocks of A_p.

    Returns (kblk_flat[int32, R*max_nnz], counts[int32, R], max_nnz).
    Padded schedule entries repeat the last valid block id (no re-DMA).
    """
    R = A_p.shape[0] // tm
    C = A_p.shape[1] // tk
    tracer_types = getattr(jax.core, "Tracer", ())
    if isinstance(A_p, tracer_types):
        # Under jit A's values are unknown: fall back to a dense schedule
        # (every block visited); kernel semantics are unchanged.
        counts = jnp.full((R,), C, dtype=jnp.int32)
        kblk = jnp.tile(jnp.arange(C, dtype=jnp.int32), R)
        return kblk, counts, C

    nz = jnp.abs(A_p) > 0
    blk_nz = np.asarray(nz.reshape(R, tm, C, tk).any(axis=(1, 3)))
    counts_np = blk_nz.sum(axis=1).astype(np.int32)
    max_nnz = max(int(counts_np.max()), 1)
    ids = np.zeros((R, max_nnz), dtype=np.int32)
    for r in range(R):
        nzc = np.nonzero(blk_nz[r])[0]
        if nzc.size:
            ids[r, :nzc.size] = nzc
            ids[r, nzc.size:] = nzc[-1]
    return jnp.asarray(ids.reshape(-1)), jnp.asarray(counts_np), max_nnz


# ---------------- wrapper ----------------

def conv_graph_forward(x, A, W, *, dropout=0.5, training=False, seed=0,
                       cast_bf16=True):
    """Pallas implementation of ConvGraph.forward(x, A)."""
    N, f_in = x.shape
    f_out = W.shape[1]
    assert A.shape == (N, N)
    assert W.shape[0] == f_in
    out_dtype = x.dtype
    stream_dtype = jnp.bfloat16 if cast_bf16 else out_dtype

    p = float(dropout)
    use_dropout = bool(training) and p > 0.0
    if use_dropout and p >= 1.0:
        return jnp.zeros((N, f_out), dtype=out_dtype)

    # ---- tile geometry ----
    f_out_p = _round_up(max(f_out, 128), 128)        # lane-dense output features
    if N >= 512:
        tm = 512
        n_rows_p = _round_up(N, 2 * tm)              # even # row tiles (2 TCs on v7x)
    else:
        tm = _round_up(N, 16)
        n_rows_p = tm
    tk = min(2048, _round_up(N, 128))
    n_cols_p = _round_up(N, tk)

    # ---- stage 1: h = dropout(x @ W), own (large) row tile ----
    tm1 = _stage1_row_tile(n_cols_p, f_in, f_out_p)
    x_p = jnp.pad(x, ((0, n_cols_p - N), (0, 0)))
    W_p = jnp.pad(W, ((0, 0), (0, f_out_p - f_out))).astype(x.dtype)
    grid1 = (n_cols_p // tm1,)
    params1 = pltpu.CompilerParams(dimension_semantics=("parallel",))
    h_shape = jax.ShapeDtypeStruct((n_cols_p, f_out_p), stream_dtype)

    if use_dropout:
        keep = jax.random.bernoulli(jax.random.PRNGKey(seed), 1.0 - p, (N, f_out))
        mask = jnp.pad(keep.astype(jnp.int8),
                       ((0, n_cols_p - N), (0, f_out_p - f_out)))
        scale = 1.0 / (1.0 - p)
        h = pl.pallas_call(
            functools.partial(_project_dropout_kernel, scale=scale),
            out_shape=h_shape,
            grid=grid1,
            in_specs=[
                pl.BlockSpec((tm1, f_in), lambda i: (i, 0)),       # x rows
                pl.BlockSpec((f_in, f_out_p), lambda i: (0, 0)),   # W (small)
                pl.BlockSpec((tm1, f_out_p), lambda i: (i, 0)),    # int8 mask
            ],
            out_specs=pl.BlockSpec((tm1, f_out_p), lambda i: (i, 0)),
            compiler_params=params1,
        )(x_p, W_p, mask)
    else:
        h = pl.pallas_call(
            _project_kernel,
            out_shape=h_shape,
            grid=grid1,
            in_specs=[
                pl.BlockSpec((tm1, f_in), lambda i: (i, 0)),
                pl.BlockSpec((f_in, f_out_p), lambda i: (0, 0)),
            ],
            out_specs=pl.BlockSpec((tm1, f_out_p), lambda i: (i, 0)),
            compiler_params=params1,
        )(x_p, W_p)

    # ---- stage 2: out = A @ h, row-parallel + K-tiled, block-sparse skip ----
    A_p = jnp.pad(A, ((0, n_rows_p - N), (0, n_cols_p - N))).astype(stream_dtype)
    kblk, counts, max_nnz = _block_structure(A_p, tm, tk)

    def a_map(i, j, kblk_ref, cnt_ref):
        return (i, kblk_ref[i * max_nnz + j])

    def h_map(i, j, kblk_ref, cnt_ref):
        return (kblk_ref[i * max_nnz + j], 0)

    out_p = pl.pallas_call(
        _aggregate_kernel,
        out_shape=jax.ShapeDtypeStruct((n_rows_p, f_out_p), out_dtype),
        grid_spec=pltpu.PrefetchScalarGridSpec(
            num_scalar_prefetch=2,
            grid=(n_rows_p // tm, max_nnz),
            in_specs=[
                pl.BlockSpec((tm, tk), a_map),          # A tile (bf16 stream)
                pl.BlockSpec((tk, f_out_p), h_map),     # h tile (bf16 stream)
            ],
            out_specs=pl.BlockSpec((tm, f_out_p), lambda i, j, kblk, cnt: (i, 0)),
            scratch_shapes=[pltpu.VMEM((tm, f_out_p), jnp.float32)],
        ),
        compiler_params=pltpu.CompilerParams(
            dimension_semantics=("parallel", "arbitrary")),
    )(kblk, counts, A_p, h)

    # Single post-kernel slice back to the logical shape; callers that can
    # consume the padded (n_rows_p, f_out_p) buffer may skip this.
    return out_p[:N, :f_out]


if __name__ == "__main__":
    # Small, module-consistent shapes: N graph nodes, size_in -> size_out.
    N, size_in, size_out = 64, 32, 16
    dropout_p = 0.5

    key = jax.random.PRNGKey(0)
    kx, ka, kw = jax.random.split(key, 3)

    x = jax.random.normal(kx, (N, size_in), dtype=jnp.float32)

    # Dense "sparse" adjacency: random 0/1 mask + self-loops, row-normalized.
    A_raw = (jax.random.uniform(ka, (N, N)) < 0.1).astype(jnp.float32)
    A_raw = A_raw + jnp.eye(N, dtype=jnp.float32)
    A = A_raw / jnp.sum(A_raw, axis=1, keepdims=True)

    # Parameter init matching nn.Parameter init: uniform(-stdv, stdv),
    # stdv = 1/sqrt(size_out).
    stdv = 1.0 / math.sqrt(size_out)
    W = jax.random.uniform(kw, (size_in, size_out), dtype=jnp.float32,
                           minval=-stdv, maxval=stdv)

    ref_eval = A @ (x @ W)

    # Exact f32 streaming path, eval mode (dropout identity) -> tight tolerance.
    out_f32 = jax.block_until_ready(
        conv_graph_forward(x, A, W, dropout=dropout_p, training=False,
                           cast_bf16=False))
    assert out_f32.shape == (N, size_out)
    assert jnp.allclose(out_f32, ref_eval, atol=1e-4, rtol=1e-4), "f32 eval mismatch"

    # Default bf16-streamed path (A, h in bf16; f32 accumulation) -> relaxed tol.
    out_eval = jax.block_until_ready(
        conv_graph_forward(x, A, W, dropout=dropout_p, training=False))
    assert out_eval.shape == (N, size_out)
    assert jnp.allclose(out_eval, ref_eval, atol=3e-2, rtol=3e-2), "bf16 eval mismatch"

    # Training mode: rebuild the same host-side keep mask for the reference.
    seed = 1234
    out_train = jax.block_until_ready(
        conv_graph_forward(x, A, W, dropout=dropout_p, training=True, seed=seed))
    keep = jax.random.bernoulli(jax.random.PRNGKey(seed), 1.0 - dropout_p,
                                (N, size_out)).astype(jnp.float32)
    ref_train = A @ ((x @ W) * keep / (1.0 - dropout_p))
    assert out_train.shape == (N, size_out)
    assert jnp.allclose(out_train, ref_train, atol=3e-2, rtol=3e-2), "train mismatch"

    print("KERNEL_OK")
</pallas_src>

<mosaic_0001>
module attributes {stable_mosaic.version = 11 : i64} {
  func.func @_project_kernel(%arg0: i32, %arg1: memref<128x32xf32, #tpu.memory_space<vmem>>, %arg2: memref<32x128xf32, #tpu.memory_space<vmem>>, %arg3: memref<128x128xf32, #tpu.memory_space<vmem>>) attributes {dimension_semantics = [#tpu.dimension_semantics<parallel>], iteration_bounds = array<i64: 1>, scalar_prefetch = 0 : i64, scratch_operands = 0 : i64, tpu.core_type = #tpu.core_type<tc>, window_params = [{transform_indices = @transform_0, window_bounds = array<i64: 128, 32>}, {pipeline_mode = #tpu.pipeline_mode<synchronous>, transform_indices = @transform_1, window_bounds = array<i64: 32, 128>}, {transform_indices = @transform_2, window_bounds = array<i64: 128, 128>}]} {
    %c0 = arith.constant 0 : index
    %c0_0 = arith.constant 0 : index
    %0 = vector.load %arg1[%c0, %c0_0] : memref<128x32xf32, #tpu.memory_space<vmem>>, vector<128x32xf32>
    %c0_1 = arith.constant 0 : index
    %c0_2 = arith.constant 0 : index
    %1 = vector.load %arg2[%c0_1, %c0_2] : memref<32x128xf32, #tpu.memory_space<vmem>>, vector<32x128xf32>
    %cst = arith.constant dense<0.000000e+00> : vector<128x128xf32>
    %2 = tpu.matmul %0, %1, %cst {dimension_numbers = #tpu.dot_dimension_numbers<[1], [0], [0], [1], [0, 0, 1, 1], [], []>} : vector<128x32xf32>, vector<32x128xf32>, vector<128x128xf32> -> vector<128x128xf32>
    %c0_3 = arith.constant 0 : index
    %c0_4 = arith.constant 0 : index
    %3 = vector.load %arg3[%c0_3, %c0_4] : memref<128x128xf32, #tpu.memory_space<vmem>>, vector<128x128xf32>
    tpu.vector_store %arg3[%c0_3, %c0_4], %2 {strides = array<i32>} : memref<128x128xf32, #tpu.memory_space<vmem>>, vector<128x128xf32>,
    return
  }
  func.func @transform_0(%arg0: i32) -> (i32, i32) {
    %c0_i32 = arith.constant 0 : i32
    %c0_i32_0 = arith.constant 0 : i32
    return %arg0, %c0_i32 : i32, i32
  }
  func.func @transform_1(%arg0: i32) -> (i32, i32) {
    %c0_i32 = arith.constant 0 : i32
    %c0_i32_0 = arith.constant 0 : i32
    %c0_i32_1 = arith.constant 0 : i32
    return %c0_i32, %c0_i32_0 : i32, i32
  }
  func.func @transform_2(%arg0: i32) -> (i32, i32) {
    %c0_i32 = arith.constant 0 : i32
    %c0_i32_0 = arith.constant 0 : i32
    return %arg0, %c0_i32 : i32, i32
  }
}

</mosaic_0001>

<llo_original>
// kernel: tpu_custom_call.1
$region0: #{tpu_custom_call.1}
  #allocation0 [shape = 'u32[]', space=smem, size = 0x4, offset = 0x4, fixed_abs, tag = 'smem constant byte address 0x4 - core index']
  #allocation1 [shape = 'u32[144,128]{1,0:T(1,128)}', space=vmem, size = 0x12000, scoped, tag = 'internal scratch']
  %s0 = inlined_call_operand.vmem [shape: f32[128,32], index: 0, kind: input, shape index: {}]
  %s1 = inlined_call_operand.vmem [shape: f32[32,128], index: 1, kind: input, shape index: {}]
  %s2 = inlined_call_operand.hbm [shape: f32[128,128], index: 2, kind: output, shape index: {}]
  %s3 = sld [smem:[#allocation0]]
  $region18: #{tpu_custom_call.1} parent=0
    _
  %s5 = ssub.s32 1, %s3
  %s6 = scalar_select 0, %s5, %s3
  $region1: #{tpu_custom_call.1} parent=0
    #allocation2 [shape = 'u8[65536]{0}', space=vmem, size = 0x10000, scoped, tag = 'output window, operand 0, single buffered']
    #allocation3 [shape = 's32[1]{0}', space=sflag, size = 0x4, scoped, tag = 'scoped memory for tpu_custom_call.1']
    %7 = vsyncpa [#allocation3], 0
    // Predicated region
    $region2: #{tpu_custom_call.1} parent=1 // pred_check
      _
    $region3: #{tpu_custom_call.1} parent=1 // pred_check_branch
      %9 = sbr.rel (0) target = $region5
    $region4: #{tpu_custom_call.1} parent=1 // pred_region
      _
    $region5: #{tpu_custom_call.1} parent=1 // pred_fallthru
      _
    // Predicated region
    $region6: #{tpu_custom_call.1} parent=1 // pred_check
      _
    $region7: #{tpu_custom_call.1} parent=1 // pred_check_branch
      %11 = sbr.rel (0) target = $region9
    $region8: #{tpu_custom_call.1} parent=1 // pred_region
      _
    $region9: #{tpu_custom_call.1} parent=1 // pred_fallthru
      _
    %v12 = vld [vmem:[%s0] sm:$0xff]
    %v13 = vld [vmem:[%s0 + $0x8] sm:$0xff]
    %v14 = vld [vmem:[%s0 + $0x10] sm:$0xff]
    %v15 = vld [vmem:[%s0 + $0x18] sm:$0xff]
    %v16 = vld [vmem:[%s0 + $0x20] sm:$0xff]
    %v17 = vld [vmem:[%s0 + $0x28] sm:$0xff]
    %v18 = vld [vmem:[%s0 + $0x30] sm:$0xff]
    %v19 = vld [vmem:[%s0 + $0x38] sm:$0xff]
    %v20 = vld [vmem:[%s0 + $0x40] sm:$0xff]
    %v21 = vld [vmem:[%s0 + $0x48] sm:$0xff]
    %v22 = vld [vmem:[%s0 + $0x50] sm:$0xff]
    %v23 = vld [vmem:[%s0 + $0x58] sm:$0xff]
    %v24 = vld [vmem:[%s0 + $0x60] sm:$0xff]
    %v25 = vld [vmem:[%s0 + $0x68] sm:$0xff]
    %v26 = vld [vmem:[%s0 + $0x70] sm:$0xff]
    %v27 = vld [vmem:[%s0 + $0x78] sm:$0xff]
    %v28 = vld [vmem:[%s1] sm:$0xff]
    %v29 = vld [vmem:[%s1 + $0x8] sm:$0xff]
    %v30 = vld [vmem:[%s1 + $0x10] sm:$0xff]
    %v31 = vld [vmem:[%s1 + $0x18] sm:$0xff]
    %vm32 = vcmask 261120
    %v34 = vsel %vm32, %v12, 0
    %v37 = vsel %vm32, %v13, 0
    %v40 = vsel %vm32, %v14, 0
    %v43 = vsel %vm32, %v15, 0
    %v46 = vsel %vm32, %v16, 0
    %v49 = vsel %vm32, %v17, 0
    %v52 = vsel %vm32, %v18, 0
    %v55 = vsel %vm32, %v19, 0
    %v58 = vsel %vm32, %v20, 0
    %v61 = vsel %vm32, %v21, 0
    %v64 = vsel %vm32, %v22, 0
    %v67 = vsel %vm32, %v23, 0
    %v70 = vsel %vm32, %v24, 0
    %v73 = vsel %vm32, %v25, 0
    %v76 = vsel %vm32, %v26, 0
    %v79 = vsel %vm32, %v27, 0
    %81 = vmatprep.subr.mxu0 0.0
    %82 = vmatpush1.msra.mxu0 0.0
    %83 = vmatprep.subr.mxu0 0.0
    %84 = vmatpush1.msra.mxu0 0.0
    %85 = vmatprep.subr.mxu0 0.0
    %86 = vmatpush1.msra.mxu0 0.0
    %87 = vmatprep.subr.mxu0 0.0
    %88 = vmatpush1.msra.mxu0 0.0
    %89 = vmatprep.subr.mxu0 0.0
    %90 = vmatpush1.msra.mxu0 0.0
    %91 = vmatprep.subr.mxu0 0.0
    %92 = vmatpush1.msra.mxu0 0.0
    %93 = vmatprep.subr.mxu0 0.0
    %94 = vmatpush1.msra.mxu0 0.0
    %95 = vmatprep.subr.mxu0 0.0
    %96 = vmatpush1.msra.mxu0 0.0
    %97 = vmatprep.subr.mxu0 0.0
    %98 = vmatpush1.msra.mxu0 0.0
    %99 = vmatprep.subr.mxu0 0.0
    %100 = vmatpush1.msra.mxu0 0.0
    %101 = vmatprep.subr.mxu0 0.0
    %102 = vmatpush1.msra.mxu0 0.0
    %103 = vmatprep.subr.mxu0 0.0
    %104 = vmatpush1.msra.mxu0 0.0
    %105 = vmatprep.subr.mxu0 0.0
    %106 = vmatpush1.msra.mxu0 %v31
    %107 = vmatprep.subr.mxu0 0.0
    %108 = vmatpush1.msra.mxu0 %v30
    %109 = vmatprep.subr.mxu0 0.0
    %110 = vmatpush1.msra.mxu0 %v29
    %111 = vmatprep.subr.mxu0 0.0
    %112 = vmatpush1.msra.mxu0 %v28
    %113 = vmatprep.subr.mxu0 0.0
    %114 = vmatpush2.msra.mxu0 0.0
    %115 = vmatprep.subr.mxu0 0.0
    %116 = vmatpush2.msra.mxu0 0.0
    %117 = vmatprep.subr.mxu0 0.0
    %118 = vmatpush2.msra.mxu0 0.0
    %119 = vmatprep.subr.mxu0 0.0
    %120 = vmatpush2.msra.mxu0 0.0
    %121 = vmatprep.subr.mxu0 0.0
    %122 = vmatpush2.msra.mxu0 0.0
    %123 = vmatprep.subr.mxu0 0.0
    %124 = vmatpush2.msra.mxu0 0.0
    %125 = vmatprep.subr.mxu0 0.0
    %126 = vmatpush2.msra.mxu0 0.0
    %127 = vmatprep.subr.mxu0 0.0
    %128 = vmatpush2.msra.mxu0 0.0
    %129 = vmatprep.subr.mxu0 0.0
    %130 = vmatpush2.msra.mxu0 0.0
    %131 = vmatprep.subr.mxu0 0.0
    %132 = vmatpush2.msra.mxu0 0.0
    %133 = vmatprep.subr.mxu0 0.0
    %134 = vmatpush2.msra.mxu0 0.0
    %135 = vmatprep.subr.mxu0 0.0
    %136 = vmatpush2.msra.mxu0 0.0
    %137 = vmatprep.subr.mxu0 0.0
    %138 = vmatpush2.msra.mxu0 0.0
    %139 = vmatprep.subr.mxu0 0.0
    %140 = vmatpush2.msra.mxu0 0.0
    %141 = vmatprep.subr.mxu0 0.0
    %142 = vmatpush2.msra.mxu0 0.0
    %143 = vmatprep.subr.mxu0 0.0
    %144 = vmatpush2.msra.mxu0 0.0
    %145 = vmatprep.mubr.f32.mxu0 0.0
    %146 = vmatmul.mubr.f32.gmra.mxu0 %v34
    %v147 = vpop.f32.mrf.mxu0
    %v148 = vadd.f32 0.0, %v147
    %v149 = vpop.f32.mrf.mxu0
    %150 = vmatprep.mubr.f32.mxu0 0.0
    %151 = vmatmul.mubr.f32.gmra.mxu0 %v37
    %v152 = vpop.f32.mrf.mxu0
    %v153 = vadd.f32 0.0, %v152
    %v154 = vpop.f32.mrf.mxu0
    %155 = vmatprep.mubr.f32.mxu0 0.0
    %156 = vmatmul.mubr.f32.gmra.mxu0 %v40
    %v157 = vpop.f32.mrf.mxu0
    %v158 = vadd.f32 0.0, %v157
    %v159 = vpop.f32.mrf.mxu0
    %160 = vmatprep.mubr.f32.mxu0 0.0
    %161 = vmatmul.mubr.f32.gmra.mxu0 %v43
    %v162 = vpop.f32.mrf.mxu0
    %v163 = vadd.f32 0.0, %v162
    %v164 = vpop.f32.mrf.mxu0
    %165 = vmatprep.mubr.f32.mxu0 0.0
    %166 = vmatmul.mubr.f32.gmra.mxu0 %v46
    %v167 = vpop.f32.mrf.mxu0
    %v168 = vadd.f32 0.0, %v167
    %v169 = vpop.f32.mrf.mxu0
    %170 = vmatprep.mubr.f32.mxu0 0.0
    %171 = vmatmul.mubr.f32.gmra.mxu0 %v49
    %v172 = vpop.f32.mrf.mxu0
    %v173 = vadd.f32 0.0, %v172
    %v174 = vpop.f32.mrf.mxu0
    %175 = vmatprep.mubr.f32.mxu0 0.0
    %176 = vmatmul.mubr.f32.gmra.mxu0 %v52
    %v177 = vpop.f32.mrf.mxu0
    %v178 = vadd.f32 0.0, %v177
    %v179 = vpop.f32.mrf.mxu0
    %180 = vmatprep.mubr.f32.mxu0 0.0
    %181 = vmatmul.mubr.f32.gmra.mxu0 %v55
    %v182 = vpop.f32.mrf.mxu0
    %v183 = vadd.f32 0.0, %v182
    %v184 = vpop.f32.mrf.mxu0
    %185 = vmatprep.mubr.f32.mxu0 0.0
    %186 = vmatmul.mubr.f32.gmra.mxu0 %v58
    %v187 = vpop.f32.mrf.mxu0
    %v188 = vadd.f32 0.0, %v187
    %v189 = vpop.f32.mrf.mxu0
    %190 = vmatprep.mubr.f32.mxu0 0.0
    %191 = vmatmul.mubr.f32.gmra.mxu0 %v61
    %v192 = vpop.f32.mrf.mxu0
    %v193 = vadd.f32 0.0, %v192
    %v194 = vpop.f32.mrf.mxu0
    %195 = vmatprep.mubr.f32.mxu0 0.0
    %196 = vmatmul.mubr.f32.gmra.mxu0 %v64
    %v197 = vpop.f32.mrf.mxu0
    %v198 = vadd.f32 0.0, %v197
    %v199 = vpop.f32.mrf.mxu0
    %200 = vmatprep.mubr.f32.mxu0 0.0
    %201 = vmatmul.mubr.f32.gmra.mxu0 %v67
    %v202 = vpop.f32.mrf.mxu0
    %v203 = vadd.f32 0.0, %v202
    %v204 = vpop.f32.mrf.mxu0
    %205 = vmatprep.mubr.f32.mxu0 0.0
    %206 = vmatmul.mubr.f32.gmra.mxu0 %v70
    %v207 = vpop.f32.mrf.mxu0
    %v208 = vadd.f32 0.0, %v207
    %v209 = vpop.f32.mrf.mxu0
    %210 = vmatprep.mubr.f32.mxu0 0.0
    %211 = vmatmul.mubr.f32.gmra.mxu0 %v73
    %v212 = vpop.f32.mrf.mxu0
    %v213 = vadd.f32 0.0, %v212
    %v214 = vpop.f32.mrf.mxu0
    %215 = vmatprep.mubr.f32.mxu0 0.0
    %216 = vmatmul.mubr.f32.gmra.mxu0 %v76
    %v217 = vpop.f32.mrf.mxu0
    %v218 = vadd.f32 0.0, %v217
    %v219 = vpop.f32.mrf.mxu0
    %220 = vmatprep.mubr.f32.mxu0 0.0
    %221 = vmatmul.mubr.f32.gmra.mxu0 %v79
    %v222 = vpop.f32.mrf.mxu0
    %v223 = vadd.f32 0.0, %v222
    %v224 = vpop.f32.mrf.mxu0
    %225 = vdwg.mxu0
    %226 = vst [vmem:[#allocation2] sm:$0xff] %v148
    %227 = vst [vmem:[#allocation2 + $0x8] sm:$0xff] %v153
    %228 = vst [vmem:[#allocation2 + $0x10] sm:$0xff] %v158
    %229 = vst [vmem:[#allocation2 + $0x18] sm:$0xff] %v163
    %230 = vst [vmem:[#allocation2 + $0x20] sm:$0xff] %v168
    %231 = vst [vmem:[#allocation2 + $0x28] sm:$0xff] %v173
    %232 = vst [vmem:[#allocation2 + $0x30] sm:$0xff] %v178
    %233 = vst [vmem:[#allocation2 + $0x38] sm:$0xff] %v183
    %234 = vst [vmem:[#allocation2 + $0x40] sm:$0xff] %v188
    %235 = vst [vmem:[#allocation2 + $0x48] sm:$0xff] %v193
    %236 = vst [vmem:[#allocation2 + $0x50] sm:$0xff] %v198
    %237 = vst [vmem:[#allocation2 + $0x58] sm:$0xff] %v203
    %238 = vst [vmem:[#allocation2 + $0x60] sm:$0xff] %v208
    %239 = vst [vmem:[#allocation2 + $0x68] sm:$0xff] %v213
    %240 = vst [vmem:[#allocation2 + $0x70] sm:$0xff] %v218
    %241 = vst [vmem:[#allocation2 + $0x78] sm:$0xff] %v223
    // Predicated region
    $region10: #{tpu_custom_call.1} parent=1 // pred_check
      _
    $region11: #{tpu_custom_call.1} parent=1 // pred_check_branch
      %243 = sbr.rel (0) target = $region13
    $region12: #{tpu_custom_call.1} parent=1 // pred_region
      %s245 = ssub.s32 2048, 2048
      %246 = vsyncadd [#allocation3], %s245
      %s247 = sshll.u32 [#allocation2], 4
      %s248 = int_to_ptr.vmem [resolvable:$true] %s247
      %253 = dma.vmem_to_hbm [thread:$0]  %s248, 2048, %s2, [#allocation3], 128, 128, 8
    $region13: #{tpu_custom_call.1} parent=1 // pred_fallthru
      _
    // Predicated region
    $region14: #{tpu_custom_call.1} parent=1 // pred_check
      _
    $region15: #{tpu_custom_call.1} parent=1 // pred_check_branch
      %255 = sbr.rel (0) target = $region17
    $region16: #{tpu_custom_call.1} parent=1 // pred_region
      %256 = dma.done [#allocation3], 2048
    $region17: #{tpu_custom_call.1} parent=1 // pred_fallthru
      _
    %257 = vsyncpa [#allocation3], 1

</llo_original>
